<compile_context>
chip_gen: v7x
topology: tpu7x:2x2x1
jax: 0.10.0
libtpu: 0.0.40
codegen_flags: <defaults>
</compile_context>

<pallas_src>
import jax
import jax.numpy as jnp
from jax.experimental import pallas as pl
from jax.experimental.pallas import tpu as pltpu

_VMEM_LIMIT_BYTES = 64 * 1024 * 1024   # safe across v5e/v6e (128 MiB) and v7x (64 MiB)
_TILE_BUDGET_BYTES = 40 * 1024 * 1024  # size tiles against this (headroom under the limit)


def _round_up(a: int, b: int) -> int:
    return (a + b - 1) // b * b


def _matmul_fullk_kernel(x_ref, w_ref, o_ref):
    # Whole K reduction resident in VMEM: one MXU dot per output tile,
    # no accumulator scratch, no init/finalize branches.
    o_ref[...] = jnp.dot(
        x_ref[...], w_ref[...], preferred_element_type=jnp.float32
    ).astype(o_ref.dtype)


def _matmul_tiledk_kernel(x_ref, w_ref, o_ref, acc_ref):
    # Grid = (M/tm, N/tn, K/tk); K is the reduction axis (last, "arbitrary").
    @pl.when(pl.program_id(2) == 0)
    def _():
        acc_ref[...] = jnp.zeros_like(acc_ref)

    acc_ref[...] += jnp.dot(
        x_ref[...], w_ref[...], preferred_element_type=jnp.float32
    )

    @pl.when(pl.program_id(2) == pl.num_programs(2) - 1)
    def _():
        o_ref[...] = acc_ref[...].astype(o_ref.dtype)


def _select_tiles(M, N, K, itemsize, budget):
    """Pick (tm, tn, tk) maximizing residency under a VMEM budget."""
    min_sub = 16 if itemsize == 2 else 8     # bf16 needs (16, 128) min tiles
    tm = min(256, _round_up(M, min_sub))
    tn = min(512, _round_up(N, 128))
    tk = _round_up(K, 128)                   # prefer full-K residency

    def fits(tk_):
        # double-buffered x, w, out tiles + worst-case f32 accumulator
        return (2 * (tm * tk_ + tk_ * tn + tm * tn) * itemsize
                + tm * tn * 4) <= budget

    while tk > 128 and not fits(tk):
        tk = _round_up(tk // 2, 128)
    return tm, tn, tk


def tied_transpose(x, weight, *, compute_dtype=None, tm=None, tn=None, tk=None):
    """out = x @ weight, where weight is the tied encoder weight (n_latents, n_inputs)."""
    M, K = x.shape
    K2, N = weight.shape
    assert K == K2, f"latent dim mismatch: {K} vs {K2}"

    out_dtype = x.dtype
    if compute_dtype is not None:
        x = x.astype(compute_dtype)
        weight = weight.astype(compute_dtype)
    itemsize = jnp.dtype(x.dtype).itemsize
    min_sub = 16 if itemsize == 2 else 8

    auto_tm, auto_tn, auto_tk = _select_tiles(M, N, K, itemsize, _TILE_BUDGET_BYTES)
    tm = auto_tm if tm is None else _round_up(tm, min_sub)
    tn = auto_tn if tn is None else _round_up(tn, 128)
    tk = auto_tk if tk is None else _round_up(tk, 128)

    # Pad to tile multiples (zero padding is exact for a matmul), slice at the end.
    Mp, Np, Kp = _round_up(M, tm), _round_up(N, tn), _round_up(K, tk)
    if (Mp, Kp) != (M, K):
        x = jnp.pad(x, ((0, Mp - M), (0, Kp - K)))
    if (Kp, Np) != (K, N):
        weight = jnp.pad(weight, ((0, Kp - K), (0, Np - N)))

    n_k = Kp // tk
    compiler_params_kw = dict(vmem_limit_bytes=_VMEM_LIMIT_BYTES)

    if n_k == 1:
        # Choose which grid axis iterates fastest (last axis) so the operand
        # with the LARGER resident footprint is NOT re-DMA'd every inner step.
        #   j inner -> x tile (tm, Kp) resident, W streamed per row block.
        #   i inner -> W tile (Kp, tn) resident, x streamed per col block.
        traffic_j_inner = Mp * Kp + (Mp // tm) * Np * Kp
        traffic_i_inner = Np * Kp + (Np // tn) * Mp * Kp
        if traffic_i_inner < traffic_j_inner:
            grid = (Np // tn, Mp // tm)                  # i is inner (fastest)
            x_map = lambda j, i: (i, 0)
            w_map = lambda j, i: (0, j)
            o_map = lambda j, i: (i, j)
        else:
            grid = (Mp // tm, Np // tn)                  # j is inner (fastest)
            x_map = lambda i, j: (i, 0)
            w_map = lambda i, j: (0, j)
            o_map = lambda i, j: (i, j)

        out = pl.pallas_call(
            _matmul_fullk_kernel,
            out_shape=jax.ShapeDtypeStruct((Mp, Np), out_dtype),
            grid_spec=pltpu.PrefetchScalarGridSpec(
                num_scalar_prefetch=0,
                grid=grid,
                in_specs=[
                    pl.BlockSpec((tm, Kp), x_map),
                    pl.BlockSpec((Kp, tn), w_map),
                ],
                out_specs=pl.BlockSpec((tm, tn), o_map),
            ),
            compiler_params=pltpu.CompilerParams(
                dimension_semantics=("parallel", "parallel"),
                **compiler_params_kw,
            ),
        )(x, weight)
    else:
        out = pl.pallas_call(
            _matmul_tiledk_kernel,
            out_shape=jax.ShapeDtypeStruct((Mp, Np), out_dtype),
            grid_spec=pltpu.PrefetchScalarGridSpec(
                num_scalar_prefetch=0,
                grid=(Mp // tm, Np // tn, n_k),
                in_specs=[
                    pl.BlockSpec((tm, tk), lambda i, j, k: (i, k)),
                    pl.BlockSpec((tk, tn), lambda i, j, k: (k, j)),
                ],
                out_specs=pl.BlockSpec((tm, tn), lambda i, j, k: (i, j)),
                scratch_shapes=[pltpu.VMEM((tm, tn), jnp.float32)],
            ),
            compiler_params=pltpu.CompilerParams(
                dimension_semantics=("parallel", "parallel", "arbitrary"),
                **compiler_params_kw,
            ),
        )(x, weight)

    if (Mp, Np) != (M, N):
        out = out[:M, :N]
    return out


if __name__ == "__main__":
    key = jax.random.PRNGKey(0)

    # --- Test 1: small, aligned SAE-decoder shapes (f32, full-K fast path) ---
    batch, n_inputs, n_latents = 16, 128, 256
    kw, kx = jax.random.split(key)
    fan_in = n_inputs
    bound = (1.0 / fan_in) ** 0.5
    weight = jax.random.uniform(
        kw, (n_latents, n_inputs), jnp.float32, minval=-bound, maxval=bound
    )
    x = jax.random.normal(kx, (batch, n_latents), jnp.float32)

    out = jax.block_until_ready(tied_transpose(x, weight))
    ref = x @ weight
    assert out.shape == (batch, n_inputs)
    assert jnp.allclose(out, ref, atol=1e-4, rtol=1e-4)

    # --- Test 2: non-divisible shapes exercise the padding path ---
    b2, ni2, nl2 = 10, 100, 200
    kw2, kx2 = jax.random.split(jax.random.PRNGKey(1))
    w2 = jax.random.uniform(
        kw2, (nl2, ni2), jnp.float32, minval=-(1.0 / ni2) ** 0.5, maxval=(1.0 / ni2) ** 0.5
    )
    x2 = jax.random.normal(kx2, (b2, nl2), jnp.float32)
    out2 = jax.block_until_ready(tied_transpose(x2, w2))
    assert out2.shape == (b2, ni2)
    assert jnp.allclose(out2, x2 @ w2, atol=1e-4, rtol=1e-4)

    # --- Test 3: multi-step K reduction path (force small tk) ---
    out3 = jax.block_until_ready(tied_transpose(x, weight, tk=128))
    assert jnp.allclose(out3, ref, atol=1e-4, rtol=1e-4)

    # --- Test 4: bf16 operands (MXU-friendly on v6e/v7x), f32 accumulation ---
    out4 = jax.block_until_ready(tied_transpose(x, weight, compute_dtype=jnp.bfloat16))
    assert out4.dtype == x.dtype
    assert jnp.allclose(out4, ref, atol=5e-2, rtol=5e-2)

    # --- Test 5: many row blocks + single column block (exercises the
    #             dynamically chosen "i inner / W resident" grid ordering) ---
    b5 = 1024
    x5 = jax.random.normal(jax.random.PRNGKey(2), (b5, n_latents), jnp.float32)
    out5 = jax.block_until_ready(tied_transpose(x5, weight, tm=256, tn=128))
    assert jnp.allclose(out5, x5 @ weight, atol=1e-4, rtol=1e-4)

    print("KERNEL_OK")
</pallas_src>

<mosaic_0001>
module attributes {stable_mosaic.version = 11 : i64} {
  func.func @_matmul_fullk_kernel(%arg0: i32, %arg1: i32, %arg2: memref<16x256xf32, #tpu.memory_space<vmem>>, %arg3: memref<256x128xf32, #tpu.memory_space<vmem>>, %arg4: memref<16x128xf32, #tpu.memory_space<vmem>>) attributes {dimension_semantics = [#tpu.dimension_semantics<parallel>, #tpu.dimension_semantics<parallel>], iteration_bounds = array<i64: 1, 1>, scalar_prefetch = 0 : i64, scratch_operands = 0 : i64, tpu.core_type = #tpu.core_type<tc>, window_params = [{transform_indices = @transform_0, window_bounds = array<i64: 16, 256>}, {transform_indices = @transform_1, window_bounds = array<i64: 256, 128>}, {transform_indices = @transform_2, window_bounds = array<i64: 16, 128>}]} {
    %c0 = arith.constant 0 : index
    %c0_0 = arith.constant 0 : index
    %0 = vector.load %arg2[%c0, %c0_0] : memref<16x256xf32, #tpu.memory_space<vmem>>, vector<16x256xf32>
    %c0_1 = arith.constant 0 : index
    %c0_2 = arith.constant 0 : index
    %1 = vector.load %arg3[%c0_1, %c0_2] : memref<256x128xf32, #tpu.memory_space<vmem>>, vector<256x128xf32>
    %cst = arith.constant dense<0.000000e+00> : vector<16x128xf32>
    %2 = tpu.matmul %0, %1, %cst {dimension_numbers = #tpu.dot_dimension_numbers<[1], [0], [0], [1], [0, 0, 1, 1], [], []>} : vector<16x256xf32>, vector<256x128xf32>, vector<16x128xf32> -> vector<16x128xf32>
    %c0_3 = arith.constant 0 : index
    %c0_4 = arith.constant 0 : index
    %3 = vector.load %arg4[%c0_3, %c0_4] : memref<16x128xf32, #tpu.memory_space<vmem>>, vector<16x128xf32>
    tpu.vector_store %arg4[%c0_3, %c0_4], %2 {strides = array<i32>} : memref<16x128xf32, #tpu.memory_space<vmem>>, vector<16x128xf32>,
    return
  }
  func.func @transform_0(%arg0: i32, %arg1: i32) -> (i32, i32) {
    %c0_i32 = arith.constant 0 : i32
    %c0_i32_0 = arith.constant 0 : i32
    return %arg0, %c0_i32 : i32, i32
  }
  func.func @transform_1(%arg0: i32, %arg1: i32) -> (i32, i32) {
    %c0_i32 = arith.constant 0 : i32
    %c0_i32_0 = arith.constant 0 : i32
    return %c0_i32, %arg1 : i32, i32
  }
  func.func @transform_2(%arg0: i32, %arg1: i32) -> (i32, i32) {
    %c0_i32 = arith.constant 0 : i32
    return %arg0, %arg1 : i32, i32
  }
}

</mosaic_0001>

<llo_original>
// kernel: tpu_custom_call.1
$region0: #{tpu_custom_call.1}
  #allocation0 [shape = 'u32[]', space=smem, size = 0x4, offset = 0x4, fixed_abs, tag = 'smem constant byte address 0x4 - core index']
  #allocation1 [shape = 'u32[144,128]{1,0:T(1,128)}', space=vmem, size = 0x12000, scoped, tag = 'internal scratch']
  %s0 = inlined_call_operand.hbm [shape: f32[16,256], index: 0, kind: input, shape index: {}]
  %s1 = inlined_call_operand.hbm [shape: f32[256,128], index: 1, kind: input, shape index: {}]
  %s2 = inlined_call_operand.hbm [shape: f32[16,128], index: 2, kind: output, shape index: {}]
  %s3 = sld [smem:[#allocation0]]
  $region26: #{tpu_custom_call.1} parent=0
    _
  %s5 = ssub.s32 1, %s3
  %s6 = scalar_select 0, %s5, %s3
  $region1: #{tpu_custom_call.1} parent=0
    #allocation2 [shape = 'u8[16384]{0}', space=vmem, size = 0x4000, scoped, tag = 'input window, operand 0, single buffered']
    #allocation3 [shape = 's32[1]{0}', space=sflag, size = 0x4, scoped, tag = 'scoped memory for tpu_custom_call.1']
    #allocation4 [shape = 's32[1]{0}', space=sflag, size = 0x4, scoped, tag = 'scoped memory for tpu_custom_call.1']
    #allocation5 [shape = 'u8[131072]{0}', space=vmem, size = 0x20000, scoped, tag = 'input window, operand 1, single buffered']
    #allocation6 [shape = 's32[1]{0}', space=sflag, size = 0x4, scoped, tag = 'scoped memory for tpu_custom_call.1']
    #allocation7 [shape = 'u8[8192]{0}', space=vmem, size = 0x2000, scoped, tag = 'output window, operand 0, single buffered']
    %7 = vsyncpa [#allocation3], 0
    %8 = vsyncpa [#allocation6], 0
    %9 = vsyncpa [#allocation4], 0
    // Predicated region
    $region2: #{tpu_custom_call.1} parent=1 // pred_check
      _
    $region3: #{tpu_custom_call.1} parent=1 // pred_check_branch
      %11 = sbr.rel (0) target = $region5
    $region4: #{tpu_custom_call.1} parent=1 // pred_region
      %s13 = ssub.s32 512, 512
      %14 = vsyncadd [#allocation3], %s13
      %s15 = sshll.u32 [#allocation2], 4
      %s16 = int_to_ptr.vmem [resolvable:$true] %s15
      %21 = dma.hbm_to_vmem [thread:$0]  %s0, 512, %s16, [#allocation3], 256, 256, 16
    $region5: #{tpu_custom_call.1} parent=1 // pred_fallthru
      _
    // Predicated region
    $region6: #{tpu_custom_call.1} parent=1 // pred_check
      _
    $region7: #{tpu_custom_call.1} parent=1 // pred_check_branch
      %23 = sbr.rel (0) target = $region9
    $region8: #{tpu_custom_call.1} parent=1 // pred_region
      %s25 = ssub.s32 4096, 4096
      %26 = vsyncadd [#allocation6], %s25
      %s27 = sshll.u32 [#allocation5], 4
      %s28 = int_to_ptr.vmem [resolvable:$true] %s27
      %33 = dma.hbm_to_vmem [thread:$0]  %s1, 4096, %s28, [#allocation6], 128, 128, 8
    $region9: #{tpu_custom_call.1} parent=1 // pred_fallthru
      _
    // Predicated region
    $region10: #{tpu_custom_call.1} parent=1 // pred_check
      _
    $region11: #{tpu_custom_call.1} parent=1 // pred_check_branch
      %35 = sbr.rel (0) target = $region13
    $region12: #{tpu_custom_call.1} parent=1 // pred_region
      %36 = dma.done [#allocation3], 512
    $region13: #{tpu_custom_call.1} parent=1 // pred_fallthru
      _
    // Predicated region
    $region14: #{tpu_custom_call.1} parent=1 // pred_check
      _
    $region15: #{tpu_custom_call.1} parent=1 // pred_check_branch
      %38 = sbr.rel (0) target = $region17
    $region16: #{tpu_custom_call.1} parent=1 // pred_region
      %39 = dma.done [#allocation6], 4096
    $region17: #{tpu_custom_call.1} parent=1 // pred_fallthru
      _
    %v40 = vld [vmem:[#allocation2] sm:$0xff]
    %v41 = vld [vmem:[#allocation2 + $0x8] sm:$0xff]
    %v42 = vld [vmem:[#allocation2 + $0x10] sm:$0xff]
    %v43 = vld [vmem:[#allocation2 + $0x18] sm:$0xff]
    %v44 = vld [vmem:[#allocation5] sm:$0xff]
    %v45 = vld [vmem:[#allocation5 + $0x8] sm:$0xff]
    %v46 = vld [vmem:[#allocation5 + $0x10] sm:$0xff]
    %v47 = vld [vmem:[#allocation5 + $0x18] sm:$0xff]
    %v48 = vld [vmem:[#allocation5 + $0x20] sm:$0xff]
    %v49 = vld [vmem:[#allocation5 + $0x28] sm:$0xff]
    %v50 = vld [vmem:[#allocation5 + $0x30] sm:$0xff]
    %v51 = vld [vmem:[#allocation5 + $0x38] sm:$0xff]
    %v52 = vld [vmem:[#allocation5 + $0x40] sm:$0xff]
    %v53 = vld [vmem:[#allocation5 + $0x48] sm:$0xff]
    %v54 = vld [vmem:[#allocation5 + $0x50] sm:$0xff]
    %v55 = vld [vmem:[#allocation5 + $0x58] sm:$0xff]
    %v56 = vld [vmem:[#allocation5 + $0x60] sm:$0xff]
    %v57 = vld [vmem:[#allocation5 + $0x68] sm:$0xff]
    %v58 = vld [vmem:[#allocation5 + $0x70] sm:$0xff]
    %v59 = vld [vmem:[#allocation5 + $0x78] sm:$0xff]
    %v60 = vld [vmem:[#allocation5 + $0x80] sm:$0xff]
    %v61 = vld [vmem:[#allocation5 + $0x88] sm:$0xff]
    %v62 = vld [vmem:[#allocation5 + $0x90] sm:$0xff]
    %v63 = vld [vmem:[#allocation5 + $0x98] sm:$0xff]
    %v64 = vld [vmem:[#allocation5 + $0xa0] sm:$0xff]
    %v65 = vld [vmem:[#allocation5 + $0xa8] sm:$0xff]
    %v66 = vld [vmem:[#allocation5 + $0xb0] sm:$0xff]
    %v67 = vld [vmem:[#allocation5 + $0xb8] sm:$0xff]
    %v68 = vld [vmem:[#allocation5 + $0xc0] sm:$0xff]
    %v69 = vld [vmem:[#allocation5 + $0xc8] sm:$0xff]
    %v70 = vld [vmem:[#allocation5 + $0xd0] sm:$0xff]
    %v71 = vld [vmem:[#allocation5 + $0xd8] sm:$0xff]
    %v72 = vld [vmem:[#allocation5 + $0xe0] sm:$0xff]
    %v73 = vld [vmem:[#allocation5 + $0xe8] sm:$0xff]
    %v74 = vld [vmem:[#allocation5 + $0xf0] sm:$0xff]
    %v75 = vld [vmem:[#allocation5 + $0xf8] sm:$0xff]
    %76 = vmatprep.subr.mxu0 0.0
    %77 = vmatpush1.msra.mxu0 %v44
    %78 = vmatprep.subr.mxu0 0.0
    %79 = vmatpush1.msra.mxu0 %v45
    %80 = vmatprep.subr.mxu0 0.0
    %81 = vmatpush1.msra.mxu0 %v46
    %82 = vmatprep.subr.mxu0 0.0
    %83 = vmatpush1.msra.mxu0 %v47
    %84 = vmatprep.subr.mxu0 0.0
    %85 = vmatpush1.msra.mxu0 %v48
    %86 = vmatprep.subr.mxu0 0.0
    %87 = vmatpush1.msra.mxu0 %v49
    %88 = vmatprep.subr.mxu0 0.0
    %89 = vmatpush1.msra.mxu0 %v50
    %90 = vmatprep.subr.mxu0 0.0
    %91 = vmatpush1.msra.mxu0 %v51
    %92 = vmatprep.subr.mxu0 0.0
    %93 = vmatpush1.msra.mxu0 %v52
    %94 = vmatprep.subr.mxu0 0.0
    %95 = vmatpush1.msra.mxu0 %v53
    %96 = vmatprep.subr.mxu0 0.0
    %97 = vmatpush1.msra.mxu0 %v54
    %98 = vmatprep.subr.mxu0 0.0
    %99 = vmatpush1.msra.mxu0 %v55
    %100 = vmatprep.subr.mxu0 0.0
    %101 = vmatpush1.msra.mxu0 %v56
    %102 = vmatprep.subr.mxu0 0.0
    %103 = vmatpush1.msra.mxu0 %v57
    %104 = vmatprep.subr.mxu0 0.0
    %105 = vmatpush1.msra.mxu0 %v58
    %106 = vmatprep.subr.mxu0 0.0
    %107 = vmatpush1.msra.mxu0 %v59
    %108 = vmatprep.subr.mxu0 0.0
    %109 = vmatpush1.msra.mxu0 %v60
    %110 = vmatprep.subr.mxu0 0.0
    %111 = vmatpush1.msra.mxu0 %v61
    %112 = vmatprep.subr.mxu0 0.0
    %113 = vmatpush1.msra.mxu0 %v62
    %114 = vmatprep.subr.mxu0 0.0
    %115 = vmatpush1.msra.mxu0 %v63
    %116 = vmatprep.subr.mxu0 0.0
    %117 = vmatpush1.msra.mxu0 %v64
    %118 = vmatprep.subr.mxu0 0.0
    %119 = vmatpush1.msra.mxu0 %v65
    %120 = vmatprep.subr.mxu0 0.0
    %121 = vmatpush1.msra.mxu0 %v66
    %122 = vmatprep.subr.mxu0 0.0
    %123 = vmatpush1.msra.mxu0 %v67
    %124 = vmatprep.subr.mxu0 0.0
    %125 = vmatpush1.msra.mxu0 %v68
    %126 = vmatprep.subr.mxu0 0.0
    %127 = vmatpush1.msra.mxu0 %v69
    %128 = vmatprep.subr.mxu0 0.0
    %129 = vmatpush1.msra.mxu0 %v70
    %130 = vmatprep.subr.mxu0 0.0
    %131 = vmatpush1.msra.mxu0 %v71
    %132 = vmatprep.subr.mxu0 0.0
    %133 = vmatpush1.msra.mxu0 %v72
    %134 = vmatprep.subr.mxu0 0.0
    %135 = vmatpush1.msra.mxu0 %v73
    %136 = vmatprep.subr.mxu0 0.0
    %137 = vmatpush1.msra.mxu0 %v74
    %138 = vmatprep.subr.mxu0 0.0
    %139 = vmatpush1.msra.mxu0 %v75
    %140 = vmatprep.mubr.f32.mxu0 %v41
    %141 = vmatmul.mubr.f32.gmra.mrb[0].mxu0 %v40
    %v142 = vpop.f32.mrb[0].mxu0
    %v143 = vadd.f32 0.0, %v142
    %v144 = vpop.f32.mrb[0].mxu0
    %145 = vmatprep.mubr.f32.mxu0 %v43
    %146 = vmatmul.mubr.f32.gmra.mrb[0].mxu0 %v42
    %v147 = vpop.f32.mrb[0].mxu0
    %v148 = vadd.f32 0.0, %v147
    %v149 = vpop.f32.mrb[0].mxu0
    %150 = vdwg.mxu0
    %151 = vst [vmem:[#allocation7] sm:$0xff] %v143
    %152 = vst [vmem:[#allocation7 + $0x8] sm:$0xff] %v148
    // Predicated region
    $region18: #{tpu_custom_call.1} parent=1 // pred_check
      _
    $region19: #{tpu_custom_call.1} parent=1 // pred_check_branch
      %154 = sbr.rel (0) target = $region21
    $region20: #{tpu_custom_call.1} parent=1 // pred_region
      %s156 = ssub.s32 256, 256
      %157 = vsyncadd [#allocation4], %s156
      %s158 = sshll.u32 [#allocation7], 4
      %s159 = int_to_ptr.vmem [resolvable:$true] %s158
      %164 = dma.vmem_to_hbm [thread:$0]  %s159, 256, %s2, [#allocation4], 128, 128, 8
    $region21: #{tpu_custom_call.1} parent=1 // pred_fallthru
      _
    // Predicated region
    $region22: #{tpu_custom_call.1} parent=1 // pred_check
      _
    $region23: #{tpu_custom_call.1} parent=1 // pred_check_branch
      %166 = sbr.rel (0) target = $region25
    $region24: #{tpu_custom_call.1} parent=1 // pred_region
      %167 = dma.done [#allocation4], 256
    $region25: #{tpu_custom_call.1} parent=1 // pred_fallthru
      _
    %168 = vsyncpa [#allocation3], 1
    %169 = vsyncpa [#allocation6], 1
    %170 = vsyncpa [#allocation4], 1

</llo_original>
